<compile_context>
chip_gen: v5e
topology: v5e:2x2
jax: 0.10.0
libtpu: 0.0.40
codegen_flags: <defaults>
</compile_context>

<pallas_src>
import functools
import math

import jax
import jax.numpy as jnp
from jax.experimental import pallas as pl
from jax.experimental.pallas import tpu as pltpu

_LN10 = math.log(10.0)


def _kt_jnp(ri_f32):
    """Kt = 0.005 / (1 + 5 * 10**Ri)**2 + 0.0001 (plain-jnp path for the tail)."""
    ripow = jnp.exp(ri_f32 * jnp.float32(_LN10))
    denom = 1.0 + 5.0 * ripow
    return 0.005 / (denom * denom) + 0.0001


def _pp_loss_kernel(x_ref, ri_ref, o_ref, *, tile_rows, lanes):
    # Native-dtype DMA; cast to f32 in-register (no wrapper-side upcast pass).
    x = x_ref[...].astype(jnp.float32)
    ri = ri_ref[...].astype(jnp.float32)

    # Kt = 0.005 / (1 + 5 * 10**Ri)**2 + 1e-4
    #   10**Ri via EUP exp; reciprocal via EUP approx + one Newton-Raphson
    #   refinement (keeps relative error far below 1e-5) instead of a VALU
    #   exact divide.
    ripow = jnp.exp(ri * jnp.float32(_LN10))
    denom = 1.0 + 5.0 * ripow
    r0 = pl.reciprocal(denom, approx=True)
    r = r0 * (2.0 - denom * r0)        # one NR step
    kt = 0.005 * (r * r) + 0.0001

    diff = x - kt
    sq = diff * diff

    # (8, lanes) vreg-shaped partial sum, no in-kernel cross-lane reduce.
    # Split the axis-0 accumulation into independent chains for VALU ILP.
    groups = tile_rows // 8
    sq = sq.reshape(groups, 8, lanes)
    if groups % 4 == 0 and groups >= 4:
        s = jnp.sum(sq.reshape(groups // 4, 4, 8, lanes), axis=0)
        partial = (s[0] + s[1]) + (s[2] + s[3])
    elif groups % 2 == 0 and groups >= 2:
        s = jnp.sum(sq.reshape(groups // 2, 2, 8, lanes), axis=0)
        partial = s[0] + s[1]
    else:
        partial = jnp.sum(sq, axis=0)
    o_ref[0] = partial


def pp_loss(X, Ri, *, max_tile_rows=4096, lanes=128):
    """MSE(X, Kt(Ri)) computed with a Pallas TPU kernel. Returns a scalar f32."""
    assert X.shape == Ri.shape, "X and Ri must have the same shape"
    total = int(X.size)

    # Keep native dtype through the DMA; f32 cast happens inside the kernel.
    x_flat = X.reshape(-1)
    ri_flat = Ri.reshape(-1)

    # Rows fully covered at 128 lanes, rounded down to a sublane multiple (8).
    kernel_rows = (total // lanes) // 8 * 8
    kernel_sum = jnp.float32(0.0)
    main = 0

    if kernel_rows >= 8:
        tile_rows = min(int(max_tile_rows), kernel_rows)
        # Prefer >= 2 blocks so the "parallel" grid axis gives both v7x
        # TensorCores (and both halves of HBM BW) something to do.
        if kernel_rows // tile_rows < 2 and kernel_rows >= 16:
            tile_rows = (kernel_rows // 2) // 8 * 8
        block = tile_rows * lanes
        num_blocks = total // block
        main = num_blocks * block

        x2 = x_flat[:main].reshape(num_blocks * tile_rows, lanes)
        ri2 = ri_flat[:main].reshape(num_blocks * tile_rows, lanes)

        kernel = functools.partial(
            _pp_loss_kernel, tile_rows=tile_rows, lanes=lanes)

        # Double-buffered inputs + headroom; default scoped VMEM already fits
        # (8 MiB at 4096-row f32 tiles) but be explicit.
        itemsize = jnp.dtype(X.dtype).itemsize + jnp.dtype(Ri.dtype).itemsize
        vmem_needed = 2 * tile_rows * lanes * itemsize
        vmem_limit = int(max(2 * vmem_needed, 32 * 1024 * 1024))

        partials = pl.pallas_call(
            kernel,
            out_shape=jax.ShapeDtypeStruct((num_blocks, 8, lanes), jnp.float32),
            grid_spec=pltpu.PrefetchScalarGridSpec(
                num_scalar_prefetch=0,
                grid=(num_blocks,),
                in_specs=[
                    pl.BlockSpec((tile_rows, lanes), lambda i: (i, 0)),
                    pl.BlockSpec((tile_rows, lanes), lambda i: (i, 0)),
                ],
                out_specs=pl.BlockSpec((1, 8, lanes), lambda i: (i, 0, 0)),
            ),
            compiler_params=pltpu.CompilerParams(
                dimension_semantics=("parallel",),
                vmem_limit_bytes=vmem_limit,
            ),
        )(x2, ri2)
        kernel_sum = jnp.sum(partials, dtype=jnp.float32)

    # Ragged (< one block) tail with plain jnp: no host-side pad pass over the
    # full tensors and no per-step iota mask inside the kernel.
    tail = total - main
    if tail > 0:
        xt = x_flat[main:].astype(jnp.float32)
        rit = ri_flat[main:].astype(jnp.float32)
        dt = xt - _kt_jnp(rit)
        tail_sum = jnp.sum(dt * dt, dtype=jnp.float32)
    else:
        tail_sum = jnp.float32(0.0)

    return (kernel_sum + tail_sum) / jnp.float32(total)


if __name__ == "__main__":
    key = jax.random.PRNGKey(0)
    kx, kr = jax.random.split(key)

    # Small NCHW-shaped inputs consistent with an image-like loss target.
    X = jax.random.uniform(kx, (2, 4, 16, 16), jnp.float32, minval=0.0, maxval=0.01)
    Ri = jax.random.uniform(kr, (2, 4, 16, 16), jnp.float32, minval=-1.0, maxval=1.0)

    loss = pp_loss(X, Ri)
    jax.block_until_ready(loss)

    # Pure-JAX reference check of the forward semantics.
    ripow = jnp.power(10.0, Ri)
    kt = 0.005 / (1.0 + 5.0 * ripow) ** 2 + 0.0001
    ref = jnp.mean((X - kt) ** 2)
    assert jnp.allclose(loss, ref, rtol=1e-5, atol=1e-9), (loss, ref)

    print("KERNEL_OK")
</pallas_src>

<mosaic_0001>
module attributes {stable_mosaic.version = 11 : i64} {
  func.func @_pp_loss_kernel(%arg0: i32, %arg1: memref<8x128xf32, #tpu.memory_space<vmem>>, %arg2: memref<8x128xf32, #tpu.memory_space<vmem>>, %arg3: memref<1x8x128xf32, #tpu.memory_space<vmem>>) attributes {dimension_semantics = [#tpu.dimension_semantics<parallel>], iteration_bounds = array<i64: 2>, scalar_prefetch = 0 : i64, scratch_operands = 0 : i64, tpu.core_type = #tpu.core_type<tc>, window_params = [{transform_indices = @transform_0, window_bounds = array<i64: 8, 128>}, {transform_indices = @transform_1, window_bounds = array<i64: 8, 128>}, {transform_indices = @transform_2, window_bounds = array<i64: 1, 8, 128>}]} {
    %c0 = arith.constant 0 : index
    %c0_0 = arith.constant 0 : index
    %0 = vector.load %arg1[%c0, %c0_0] : memref<8x128xf32, #tpu.memory_space<vmem>>, vector<8x128xf32>
    %c0_1 = arith.constant 0 : index
    %c0_2 = arith.constant 0 : index
    %1 = vector.load %arg2[%c0_1, %c0_2] : memref<8x128xf32, #tpu.memory_space<vmem>>, vector<8x128xf32>
    %cst = arith.constant 2.30258512 : f32
    %2 = vector.broadcast %cst : f32 to vector<8x128xf32>
    %3 = arith.mulf %1, %2 : vector<8x128xf32>
    %4 = math.exp %3 : vector<8x128xf32>
    %cst_3 = arith.constant 5.000000e+00 : f32
    %5 = vector.broadcast %cst_3 : f32 to vector<8x128xf32>
    %6 = arith.mulf %5, %4 : vector<8x128xf32>
    %cst_4 = arith.constant 1.000000e+00 : f32
    %7 = vector.broadcast %cst_4 : f32 to vector<8x128xf32>
    %8 = arith.addf %7, %6 : vector<8x128xf32>
    %9 = tpu.reciprocal %8 {approx = true} : vector<8x128xf32> -> vector<8x128xf32>
    %10 = arith.mulf %8, %9 : vector<8x128xf32>
    %cst_5 = arith.constant 2.000000e+00 : f32
    %11 = vector.broadcast %cst_5 : f32 to vector<8x128xf32>
    %12 = arith.subf %11, %10 : vector<8x128xf32>
    %13 = arith.mulf %9, %12 : vector<8x128xf32>
    %14 = arith.mulf %13, %13 : vector<8x128xf32>
    %cst_6 = arith.constant 5.000000e-03 : f32
    %15 = vector.broadcast %cst_6 : f32 to vector<8x128xf32>
    %16 = arith.mulf %15, %14 : vector<8x128xf32>
    %cst_7 = arith.constant 9.99999974E-5 : f32
    %17 = vector.broadcast %cst_7 : f32 to vector<8x128xf32>
    %18 = arith.addf %16, %17 : vector<8x128xf32>
    %19 = arith.subf %0, %18 : vector<8x128xf32>
    %20 = arith.mulf %19, %19 : vector<8x128xf32>
    %21 = vector.shape_cast %20 : vector<8x128xf32> to vector<1x8x128xf32>
    %cst_8 = arith.constant dense<0.000000e+00> : vector<8x128xf32>
    %22 = vector.multi_reduction <add>, %21, %cst_8 [0] : vector<1x8x128xf32> to vector<8x128xf32>
    %c0_9 = arith.constant 0 : index
    %c0_10 = arith.constant 0 : index
    %c0_11 = arith.constant 0 : index
    %23 = vector.load %arg3[%c0_9, %c0_10, %c0_11] : memref<1x8x128xf32, #tpu.memory_space<vmem>>, vector<1x8x128xf32>
    %24 = vector.shape_cast %23 : vector<1x8x128xf32> to vector<8x128xf32>
    %25 = vector.shape_cast %22 : vector<8x128xf32> to vector<1x8x128xf32>
    tpu.vector_store %arg3[%c0_9, %c0_10, %c0_11], %25 {strides = array<i32>} : memref<1x8x128xf32, #tpu.memory_space<vmem>>, vector<1x8x128xf32>,
    return
  }
  func.func @transform_0(%arg0: i32) -> (i32, i32) {
    %c0_i32 = arith.constant 0 : i32
    %c0_i32_0 = arith.constant 0 : i32
    return %arg0, %c0_i32 : i32, i32
  }
  func.func @transform_1(%arg0: i32) -> (i32, i32) {
    %c0_i32 = arith.constant 0 : i32
    %c0_i32_0 = arith.constant 0 : i32
    return %arg0, %c0_i32 : i32, i32
  }
  func.func @transform_2(%arg0: i32) -> (i32, i32, i32) {
    %c0_i32 = arith.constant 0 : i32
    %c0_i32_0 = arith.constant 0 : i32
    %c0_i32_1 = arith.constant 0 : i32
    return %arg0, %c0_i32, %c0_i32_0 : i32, i32, i32
  }
}

</mosaic_0001>

<llo_original>
// kernel: tpu_custom_call.1
$region0: #{tpu_custom_call.1}
  #allocation0 [shape = 'u32[]', space=smem, size = 0x4, offset = 0x4, fixed_abs, tag = 'smem constant byte address 0x4 - core index']
  #allocation1 [shape = 'u32[72,128]{1,0:T(1,128)}', space=vmem, size = 0x9000, scoped, tag = 'internal scratch']
  %s0 = inlined_call_operand.hbm [shape: f32[16,128], index: 0, kind: input, shape index: {}]
  %s1 = inlined_call_operand.hbm [shape: f32[16,128], index: 1, kind: input, shape index: {}]
  %s2 = inlined_call_operand.hbm [shape: f32[2,8,128], index: 2, kind: output, shape index: {}]
  %s3 = sld [smem:[#allocation0]]
  $region49: #{tpu_custom_call.1} parent=0
    _
  %s5 = ssub.s32 1, %s3
  %s6 = scalar_select 0, %s5, %s3
  $region1: #{tpu_custom_call.1} parent=0
    #allocation2 [shape = 'u8[8192]{0}', space=vmem, size = 0x2000, scoped, tag = 'input window, operand 0']
    #allocation3 [shape = 's32[2]{0}', space=sflag, size = 0x8, scoped, tag = 'scoped memory for tpu_custom_call.1']
    #allocation4 [shape = 's32[2]{0}', space=sflag, size = 0x8, scoped, tag = 'scoped memory for tpu_custom_call.1']
    #allocation5 [shape = 'u8[8192]{0}', space=vmem, size = 0x2000, scoped, tag = 'input window, operand 1']
    #allocation6 [shape = 's32[2]{0}', space=sflag, size = 0x8, scoped, tag = 'scoped memory for tpu_custom_call.1']
    #allocation7 [shape = 'u8[8192]{0}', space=vmem, size = 0x2000, scoped, tag = 'output window, operand 0']
    %7 = vsyncpa [#allocation3], 0
    %s8 = scalar_lea.sflag [#allocation3], 1
    %9 = vsyncpa %s8, 0
    %10 = vsyncpa [#allocation6], 0
    %s11 = scalar_lea.sflag [#allocation6], 1
    %12 = vsyncpa %s11, 0
    %13 = vsyncpa [#allocation4], 0
    %s14 = scalar_lea.sflag [#allocation4], 1
    %15 = vsyncpa %s14, 0
    loop: start=0, step=1, limit=4
    $region2: #{tpu_custom_call.1} parent=1 // loop_pre_header
      _
    $region3: #{tpu_custom_call.1} parent=1 // loop_header
      %s17 = sphi 0, %s21
      %p18 = scmp.ge.s32.totalorder %s17, 4
      %s27 = sphi 0, %s29
      %s30 = sphi 0, %s27
      %s31 = sphi 0, %s30
      %s47 = sphi 0, %s31
      %s53 = sphi 0, %s55
      %s56 = sphi 0, %s53
      %s57 = sphi 0, %s56
      %s73 = sphi 0, %s57
      %s79 = sphi 0, %s81
      %s82 = sphi 0, %s79
      %s83 = sphi 0, %s82
      %s99 = sphi 0, %s83
    $region4: #{tpu_custom_call.1} parent=1 // loop_header_branch
      %20 = sbr.rel (%p18) target = $region8
    $region5: #{tpu_custom_call.1} parent=1 // loop_body
      %s22 = ssub.s32 %s17, 1
      %s23 = ssub.s32 %s17, 2
      %s24 = sadd.s32 %s17, 1
      %s25 = ssub.s32 %s17, %s24
      %p26 = scmp.eq.s32.totalorder %s25, 0
      %s28 = sadd.s32 %s27, 1
      %s29 = scalar_select %p26, %s27, %s28
      %p32 = pneg %p26
      %p33 = scmp.eq.s32.totalorder %s17, 1
      %p34 = por %p32, %p33
      %p35 = scmp.ne.s32.totalorder %s27, %s30
      %p36 = scmp.eq.s32.totalorder %s17, 0
      %p37 = por %p35, %p36
      %p38 = scmp.ne.s32.totalorder %s27, %s30
      %p39 = scmp.eq.s32.totalorder %s22, 1
      %p40 = por %p38, %p39
      %p41 = scmp.ne.s32.totalorder %s30, %s31
      %p42 = scmp.eq.s32.totalorder %s22, 0
      %p43 = por %p41, %p42
      %p44 = scmp.ne.s32.totalorder %s30, %s31
      %p45 = scmp.eq.s32.totalorder %s23, 1
      %p46 = por %p44, %p45
      %p48 = scmp.ne.s32.totalorder %s31, %s47
      %p49 = scmp.eq.s32.totalorder %s23, 0
      %p50 = por %p48, %p49
      %s51 = ssub.s32 %s17, %s24
      %p52 = scmp.eq.s32.totalorder %s51, 0
      %s54 = sadd.s32 %s53, 1
      %s55 = scalar_select %p52, %s53, %s54
      %p58 = pneg %p52
      %p59 = scmp.eq.s32.totalorder %s17, 1
      %p60 = por %p58, %p59
      %p61 = scmp.ne.s32.totalorder %s53, %s56
      %p62 = scmp.eq.s32.totalorder %s17, 0
      %p63 = por %p61, %p62
      %p64 = scmp.ne.s32.totalorder %s53, %s56
      %p65 = scmp.eq.s32.totalorder %s22, 1
      %p66 = por %p64, %p65
      %p67 = scmp.ne.s32.totalorder %s56, %s57
      %p68 = scmp.eq.s32.totalorder %s22, 0
      %p69 = por %p67, %p68
      %p70 = scmp.ne.s32.totalorder %s56, %s57
      %p71 = scmp.eq.s32.totalorder %s23, 1
      %p72 = por %p70, %p71
      %p74 = scmp.ne.s32.totalorder %s57, %s73
      %p75 = scmp.eq.s32.totalorder %s23, 0
      %p76 = por %p74, %p75
      %s77 = ssub.s32 %s17, %s24
      %p78 = scmp.eq.s32.totalorder %s77, 0
      %s80 = sadd.s32 %s79, 1
      %s81 = scalar_select %p78, %s79, %s80
      %p84 = pneg %p78
      %p85 = scmp.eq.s32.totalorder %s17, 1
      %p86 = por %p84, %p85
      %p87 = scmp.ne.s32.totalorder %s79, %s82
      %p88 = scmp.eq.s32.totalorder %s17, 0
      %p89 = por %p87, %p88
      %p90 = scmp.ne.s32.totalorder %s79, %s82
      %p91 = scmp.eq.s32.totalorder %s22, 1
      %p92 = por %p90, %p91
      %p93 = scmp.ne.s32.totalorder %s82, %s83
      %p94 = scmp.eq.s32.totalorder %s22, 0
      %p95 = por %p93, %p94
      %p96 = scmp.ne.s32.totalorder %s82, %s83
      %p97 = scmp.eq.s32.totalorder %s23, 1
      %p98 = por %p96, %p97
      %p100 = scmp.ne.s32.totalorder %s83, %s99
      %p101 = scmp.eq.s32.totalorder %s23, 0
      %p102 = por %p100, %p101
      %p103 = scmp.le.s32.totalorder 1, %s17
      %p104 = scmp.lt.s32.totalorder %s17, 3
      %p105 = pnand %p103, %p104
      %p106 = pneg %p105
      // Predicated region
      $region9: #{tpu_custom_call.1} parent=5 // pred_check
        _
      $region10: #{tpu_custom_call.1} parent=5 // pred_check_branch
        %108 = sbr.rel (%p105) target = $region12
      $region11: #{tpu_custom_call.1} parent=5 // pred_region
        %s109 = ssub.s32 %s17, 1
      $region12: #{tpu_custom_call.1} parent=5 // pred_fallthru
        _
      %p110 = scmp.lt.s32.totalorder %s17, 2
      // Predicated region
      $region13: #{tpu_custom_call.1} parent=5 // pred_check
        %p111 = pneg %p110
      $region14: #{tpu_custom_call.1} parent=5 // pred_check_branch
        %113 = sbr.rel (%p111) target = $region16
      $region15: #{tpu_custom_call.1} parent=5 // pred_region
        // Predicated region
        $region17: #{tpu_custom_call.1} parent=15 // pred_check
          %p114 = pneg %p37
        $region18: #{tpu_custom_call.1} parent=15 // pred_check_branch
          %116 = sbr.rel (%p114) target = $region20
        $region19: #{tpu_custom_call.1} parent=15 // pred_region
          %s117 = sand.u32 %s27, 1
          %s118 = scalar_lea.sflag [#allocation3], %s117
          %s119 = sand.u32 %s27, 1
          %s120 = smul.addr %s119, 8
          %s121 = scalar_lea.vmem [#allocation2], %s120
          %123 = vsyncadd %s118, 0
          %s124 = smul.addr %s17, 8
          %s125 = scalar_lea.hbm %s0, %s124
          %s127 = sshll.u32 %s125, 4
          %s128 = int_to_ptr.hbm [resolvable:$true] %s127
          %s129 = sshll.u32 %s121, 4
          %s130 = int_to_ptr.vmem [resolvable:$true] %s129
          %132 = dma.hbm_to_vmem [thread:$0]  %s128, 128, %s130, %s118
        $region20: #{tpu_custom_call.1} parent=15 // pred_fallthru
          _
        // Predicated region
        $region21: #{tpu_custom_call.1} parent=15 // pred_check
          %p133 = pneg %p63
        $region22: #{tpu_custom_call.1} parent=15 // pred_check_branch
          %135 = sbr.rel (%p133) target = $region24
        $region23: #{tpu_custom_call.1} parent=15 // pred_region
          %s136 = sand.u32 %s53, 1
          %s137 = scalar_lea.sflag [#allocation6], %s136
          %s138 = sand.u32 %s53, 1
          %s139 = smul.addr %s138, 8
          %s140 = scalar_lea.vmem [#allocation5], %s139
          %142 = vsyncadd %s137, 0
          %s143 = smul.addr %s17, 8
          %s144 = scalar_lea.hbm %s1, %s143
          %s146 = sshll.u32 %s144, 4
          %s147 = int_to_ptr.hbm [resolvable:$true] %s146
          %s148 = sshll.u32 %s140, 4
          %s149 = int_to_ptr.vmem [resolvable:$true] %s148
          %151 = dma.hbm_to_vmem [thread:$0]  %s147, 128, %s149, %s137
        $region24: #{tpu_custom_call.1} parent=15 // pred_fallthru
          _
      $region16: #{tpu_custom_call.1} parent=5 // pred_fallthru
        _
      %p152 = scmp.le.s32.totalorder 1, %s17
      %p153 = scmp.lt.s32.totalorder %s17, 3
      %p154 = pnand %p152, %p153
      %p155 = pneg %p154
      // Predicated region
      $region25: #{tpu_custom_call.1} parent=5 // pred_check
        _
      $region26: #{tpu_custom_call.1} parent=5 // pred_check_branch
        %157 = sbr.rel (%p154) target = $region28
      $region27: #{tpu_custom_call.1} parent=5 // pred_region
        %s158 = ssub.s32 %s17, 1
        %s159 = sand.u32 %s30, 1
        %s160 = scalar_lea.sflag [#allocation3], %s159
        %s161 = sand.u32 %s30, 1
        %s162 = smul.addr %s161, 8
        %s163 = scalar_lea.vmem [#allocation2], %s162
        // Predicated region
        $region29: #{tpu_custom_call.1} parent=27 // pred_check
          %p164 = pneg %p43
        $region30: #{tpu_custom_call.1} parent=27 // pred_check_branch
          %166 = sbr.rel (%p164) target = $region32
        $region31: #{tpu_custom_call.1} parent=27 // pred_region
          %168 = dma.done %s160, 128
        $region32: #{tpu_custom_call.1} parent=27 // pred_fallthru
          _
        %s169 = sand.u32 %s56, 1
        %s170 = scalar_lea.sflag [#allocation6], %s169
        %s171 = sand.u32 %s56, 1
        %s172 = smul.addr %s171, 8
        %s173 = scalar_lea.vmem [#allocation5], %s172
        // Predicated region
        $region33: #{tpu_custom_call.1} parent=27 // pred_check
          %p174 = pneg %p69
        $region34: #{tpu_custom_call.1} parent=27 // pred_check_branch
          %176 = sbr.rel (%p174) target = $region36
        $region35: #{tpu_custom_call.1} parent=27 // pred_region
          %178 = dma.done %s170, 128
        $region36: #{tpu_custom_call.1} parent=27 // pred_fallthru
          _
        %s179 = sand.u32 %s30, 1
        %s180 = scalar_lea.sflag [#allocation3], %s179
        %s181 = sand.u32 %s30, 1
        %s182 = smul.addr %s181, 8
        %s183 = scalar_lea.vmem [#allocation2], %s182
        %p184 = pneg %p43
        %p185 = pneg %p40
        %s186 = sand.u32 %s56, 1
        %s187 = scalar_lea.sflag [#allocation6], %s186
        %s188 = sand.u32 %s56, 1
        %s189 = smul.addr %s188, 8
        %s190 = scalar_lea.vmem [#allocation5], %s189
        %p191 = pneg %p69
        %p192 = pneg %p66
        %p193 = pneg %p95
        %p194 = pneg %p92
        %s195 = sand.u32 %s82, 1
        %s196 = scalar_lea.sflag [#allocation4], %s195
        %s197 = sand.u32 %s82, 1
        %s198 = smul.addr %s197, 8
        %s199 = scalar_lea.vmem [#allocation7], %s198
        %v200 = vld [vmem:[%s163] sm:$0xff]
        %v201 = vld [vmem:[%s173] sm:$0xff]
        %v202 = vmul.f32 %v201, 2.3025851
        %v203 = vmul.f32 %v202, 1.442695
        %v204 = vpow.pop %v203
        %v205 = vmul.f32 %v204, 5.0
        %v206 = vadd.f32 %v205, 1.0
        %v207 = vrcp.pop %v206
        %v208 = vmul.f32 %v206, %v207
        %v209 = vsub.f32 2.0, %v208
        %v210 = vmul.f32 %v207, %v209
        %v211 = vmul.f32 %v210, %v210
        %v212 = vmul.f32 %v211, 0.005
        %v213 = vadd.f32 %v212, 0.0001
        %v214 = vsub.f32 %v200, %v213
        %v215 = vmul.f32 %v214, %v214
        %v216 = vadd.f32 %v215, 0.0
        %217 = vst [vmem:[%s199] sm:$0xff] %v216
        %s218 = sand.u32 %s82, 1
        %s219 = scalar_lea.sflag [#allocation4], %s218
        %s220 = sand.u32 %s82, 1
        %s221 = smul.addr %s220, 8
        %s222 = scalar_lea.vmem [#allocation7], %s221
        // Predicated region
        $region37: #{tpu_custom_call.1} parent=27 // pred_check
          %p223 = pneg %p92
        $region38: #{tpu_custom_call.1} parent=27 // pred_check_branch
          %225 = sbr.rel (%p223) target = $region40
        $region39: #{tpu_custom_call.1} parent=27 // pred_region
          %227 = vsyncadd %s219, 0
          %s228 = smul.addr %s22, 8
          %s229 = scalar_lea.hbm %s2, %s228
          %s231 = sshll.u32 %s222, 4
          %s232 = int_to_ptr.vmem [resolvable:$true] %s231
          %s233 = sshll.u32 %s229, 4
          %s234 = int_to_ptr.hbm [resolvable:$true] %s233
          %236 = dma.vmem_to_hbm [thread:$0]  %s232, 128, %s234, %s219
        $region40: #{tpu_custom_call.1} parent=27 // pred_fallthru
          _
      $region28: #{tpu_custom_call.1} parent=5 // pred_fallthru
        _
      %p237 = scmp.le.s32.totalorder 2, %s17
      // Predicated region
      $region41: #{tpu_custom_call.1} parent=5 // pred_check
        %p238 = pneg %p237
      $region42: #{tpu_custom_call.1} parent=5 // pred_check_branch
        %240 = sbr.rel (%p238) target = $region44
      $region43: #{tpu_custom_call.1} parent=5 // pred_region
        %s241 = ssub.s32 %s17, 2
        // Predicated region
        $region45: #{tpu_custom_call.1} parent=43 // pred_check
          %p242 = pneg %p98
        $region46: #{tpu_custom_call.1} parent=43 // pred_check_branch
          %244 = sbr.rel (%p242) target = $region48
        $region47: #{tpu_custom_call.1} parent=43 // pred_region
          %s245 = sand.u32 %s83, 1
          %s246 = scalar_lea.sflag [#allocation4], %s245
          %s247 = sand.u32 %s83, 1
          %s248 = smul.addr %s247, 8
          %s249 = scalar_lea.vmem [#allocation7], %s248
          %251 = dma.done %s246, 128
        $region48: #{tpu_custom_call.1} parent=43 // pred_fallthru
          _
      $region44: #{tpu_custom_call.1} parent=5 // pred_fallthru
        _
    $region6: #{tpu_custom_call.1} parent=1 // loop_footer
      %s21 = sadd.s32 1, %s17
    $region7: #{tpu_custom_call.1} parent=1 // loop_footer_branch
      %16 = sbr.rel target = $region3
    $region8: #{tpu_custom_call.1} parent=1 // loop_exit
      _
    %252 = vsyncpa [#allocation3], 1
    %s253 = scalar_lea.sflag [#allocation3], 1
    %254 = vsyncpa %s253, 1
    %255 = vsyncpa [#allocation6], 1
    %s256 = scalar_lea.sflag [#allocation6], 1
    %257 = vsyncpa %s256, 1
    %258 = vsyncpa [#allocation4], 1
    %s259 = scalar_lea.sflag [#allocation4], 1
    %260 = vsyncpa %s259, 1

</llo_original>
